<compile_context>
chip_gen: v5e
topology: v5e:2x2
jax: 0.10.0
libtpu: 0.0.40
codegen_flags: <defaults>
</compile_context>

<pallas_src>
import functools
import math

import jax
import jax.numpy as jnp
from jax.experimental import pallas as pl
from jax.experimental.pallas import tpu as pltpu


_SUBLANE_PACK = {4: 8, 2: 16, 1: 32}     # dtype itemsize -> sublane packing
_MIB = 1 << 20
_CHUNK_TEMP_BUDGET = 4 * _MIB            # target bytes for in-kernel f32 temporaries
_F32_TEMP_BYTES_PER_ELEM = 12            # ~peak live f32 temps per element in a chunk
_ROW_TILE_CAP = 2048


def _vmem_budgets():
    """(pipelined-tile budget, scoped vmem limit) in bytes, per TPU generation."""
    try:
        cap = pltpu.get_tpu_info().vmem_capacity_bytes
    except Exception:
        cap = 64 * _MIB                      # conservative fallback (v7x-sized)
    if cap >= 100 * _MIB:                    # v5e / v6e: 128 MiB physical VMEM
        return 56 * _MIB, 96 * _MIB
    return 20 * _MIB, 40 * _MIB              # v7x: 64 MiB physical VMEM per TC


def _choose_tiles(rows: int, hidden: int, dtype, tile_budget: int):
    """Pick (row_tile, chunk_rows): big DMA tile, small in-kernel f32 footprint."""
    itemsize = jnp.dtype(dtype).itemsize
    sublane = _SUBLANE_PACK.get(itemsize, 8)
    rows_up = pl.cdiv(rows, sublane) * sublane

    # Sub-chunk size: bound the f32 temporaries to ~_CHUNK_TEMP_BUDGET.
    chunk = _CHUNK_TEMP_BUDGET // max(hidden * _F32_TEMP_BYTES_PER_ELEM, 1)
    chunk = max(sublane, (chunk // sublane) * sublane)
    chunk = min(chunk, 512, rows_up)
    chunk = max(chunk, sublane)

    # DMA tile: as many chunks as fit in the double-buffered (in + out) budget.
    per_chunk_io = chunk * hidden * 4 * itemsize            # 2x in + 2x out buffers
    temp_bytes = chunk * hidden * _F32_TEMP_BYTES_PER_ELEM
    n_chunks = max(1, (tile_budget - temp_bytes) // max(per_chunk_io, 1))
    n_chunks = min(n_chunks, pl.cdiv(rows_up, chunk))
    row_tile = min(n_chunks * chunk, _ROW_TILE_CAP)
    row_tile = max(chunk, (row_tile // chunk) * chunk)
    return row_tile, chunk


def _rmsnorm_kernel(x_ref, w_ref, o_ref, *, eps, inv_hidden, chunk, n_chunks):
    # x_ref: (row_tile, hidden) in the I/O dtype; w_ref: (1, hidden) float32
    # (pre-cast in the wrapper); o_ref: (row_tile, hidden) in the I/O dtype.
    # Rows past the true row count (partial last grid block) hold garbage, but
    # rows are independent and Pallas drops their stores.
    w = w_ref[...]

    def body(c, carry):
        r0 = pl.multiple_of(c * chunk, chunk)
        x = x_ref[pl.ds(r0, chunk), :].astype(jnp.float32)
        ssq = jnp.sum(x * x, axis=-1, keepdims=True)
        inv = jax.lax.rsqrt(ssq * inv_hidden + eps)          # EUP rsqrt, free slot
        o_ref[pl.ds(r0, chunk), :] = (w * (x * inv)).astype(o_ref.dtype)
        return carry

    jax.lax.fori_loop(0, n_chunks, body, 0, unroll=(n_chunks <= 8))


def llama_rmsnorm(data: jax.Array, weight: jax.Array, eps: float = 1e-6,
                  *, row_tile: int | None = None,
                  chunk_rows: int | None = None) -> jax.Array:
    """RMSNorm over the last axis of `data`, scaled by `weight` (LlamaRMSNorm)."""
    orig_shape = data.shape
    orig_dtype = data.dtype
    hidden = orig_shape[-1]
    rows = int(math.prod(orig_shape[:-1])) if len(orig_shape) > 1 else 1

    tile_budget, vmem_limit = _vmem_budgets()
    auto_tile, auto_chunk = _choose_tiles(rows, hidden, orig_dtype, tile_budget)
    if row_tile is None:
        row_tile = auto_tile
    if chunk_rows is None:
        chunk_rows = min(auto_chunk, row_tile)

    sublane = _SUBLANE_PACK.get(jnp.dtype(orig_dtype).itemsize, 8)
    assert chunk_rows % sublane == 0, "chunk_rows must be a multiple of the sublane packing"
    assert row_tile % chunk_rows == 0, "row_tile must be a multiple of chunk_rows"
    n_chunks = row_tile // chunk_rows

    x2d = data.reshape(rows, hidden)
    # Weight is a single row: pre-cast to f32 once (multiply happens in f32,
    # matching the module), so the kernel never re-casts it per grid step.
    w2d = weight.reshape(1, hidden).astype(jnp.float32)

    kernel = functools.partial(
        _rmsnorm_kernel, eps=float(eps), inv_hidden=1.0 / hidden,
        chunk=chunk_rows, n_chunks=n_chunks)

    out = pl.pallas_call(
        kernel,
        out_shape=jax.ShapeDtypeStruct((rows, hidden), orig_dtype),
        grid_spec=pltpu.PrefetchScalarGridSpec(
            num_scalar_prefetch=0,
            grid=(pl.cdiv(rows, row_tile),),       # no row padding: partial last block
            in_specs=[
                pl.BlockSpec((row_tile, hidden), lambda i: (i, 0)),
                pl.BlockSpec((1, hidden), lambda i: (0, 0)),   # resident weight row
            ],
            out_specs=pl.BlockSpec((row_tile, hidden), lambda i: (i, 0)),
        ),
        compiler_params=pltpu.CompilerParams(
            dimension_semantics=("parallel",),     # rows shard across TCs on v7x
            vmem_limit_bytes=vmem_limit,
        ),
    )(x2d, w2d)

    return out.reshape(orig_shape)


def _reference(data, weight, eps=1e-6):
    # Mirrors the PyTorch module: f32 stats, f32 scale + weight multiply, cast last.
    x = data.astype(jnp.float32)
    v = jnp.mean(x * x, axis=-1, keepdims=True)
    y = x * jax.lax.rsqrt(v + eps)
    return (weight.astype(jnp.float32) * y).astype(data.dtype)


if __name__ == "__main__":
    key = jax.random.PRNGKey(0)
    k1, k2, k3, k4, k5, k6 = jax.random.split(key, 6)

    # Case 1: small f32, hidden < 128 (full-dim lane block, single grid step).
    x = jax.random.normal(k1, (2, 8, 32), dtype=jnp.float32)
    w = 1.0 + 0.01 * jax.random.normal(k2, (32,), dtype=jnp.float32)
    out = jax.block_until_ready(llama_rmsnorm(x, w, eps=1e-6))
    ref = _reference(x, w, eps=1e-6)
    assert out.shape == x.shape and out.dtype == x.dtype
    assert jnp.allclose(out, ref, atol=1e-5, rtol=1e-5), "f32 mismatch vs reference"

    # Case 2: bf16 with ragged row count (partial block, bf16 sublane packing).
    x2 = jax.random.normal(k3, (2, 9, 256), dtype=jnp.float32).astype(jnp.bfloat16)
    w2 = (1.0 + 0.01 * jax.random.normal(k4, (256,), dtype=jnp.float32)).astype(jnp.bfloat16)
    out2 = jax.block_until_ready(llama_rmsnorm(x2, w2, eps=1e-6))
    ref2 = _reference(x2, w2, eps=1e-6)
    assert out2.shape == x2.shape and out2.dtype == x2.dtype
    assert jnp.allclose(out2.astype(jnp.float32), ref2.astype(jnp.float32),
                        atol=2e-2, rtol=2e-2), "bf16 mismatch vs reference"

    # Case 3: multi-step grid with a partial final block and >1 in-kernel chunk
    # (exercises the no-row-pad path: garbage rows in the last block are dropped).
    x3 = jax.random.normal(k5, (4, 37, 128), dtype=jnp.float32)
    w3 = 1.0 + 0.01 * jax.random.normal(k6, (128,), dtype=jnp.float32)
    out3 = jax.block_until_ready(llama_rmsnorm(x3, w3, eps=1e-6, row_tile=32, chunk_rows=16))
    ref3 = _reference(x3, w3, eps=1e-6)
    assert out3.shape == x3.shape and out3.dtype == x3.dtype
    assert jnp.allclose(out3, ref3, atol=1e-5, rtol=1e-5), "partial-block mismatch vs reference"

    print("KERNEL_OK")
</pallas_src>

<mosaic_0001>
module attributes {stable_mosaic.version = 11 : i64} {
  func.func @_rmsnorm_kernel(%arg0: i32, %arg1: memref<16x32xf32, #tpu.memory_space<vmem>>, %arg2: memref<1x32xf32, #tpu.memory_space<vmem>>, %arg3: memref<16x32xf32, #tpu.memory_space<vmem>>) attributes {dimension_semantics = [#tpu.dimension_semantics<parallel>], iteration_bounds = array<i64: 1>, scalar_prefetch = 0 : i64, scratch_operands = 0 : i64, tpu.core_type = #tpu.core_type<tc>, window_params = [{transform_indices = @transform_0, window_bounds = array<i64: 16, 32>}, {pipeline_mode = #tpu.pipeline_mode<synchronous>, transform_indices = @transform_1, window_bounds = array<i64: 1, 32>}, {transform_indices = @transform_2, window_bounds = array<i64: 16, 32>}]} {
    %c0 = arith.constant 0 : index
    %c0_0 = arith.constant 0 : index
    %0 = vector.load %arg2[%c0, %c0_0] : memref<1x32xf32, #tpu.memory_space<vmem>>, vector<1x32xf32>
    %c0_i32 = arith.constant 0 : i32
    %c16_i32 = arith.constant 16 : i32
    %1 = arith.muli %c0_i32, %c16_i32 : i32
    %2 = tpu.assume_multiple %1, 16 : i32
    %3 = arith.index_cast %2 : i32 to index
    %c0_1 = arith.constant 0 : index
    %4 = vector.load %arg1[%3, %c0_1] : memref<16x32xf32, #tpu.memory_space<vmem>>, vector<16x32xf32>
    %5 = arith.mulf %4, %4 : vector<16x32xf32>
    %cst = arith.constant dense<0.000000e+00> : vector<16xf32>
    %6 = vector.multi_reduction <add>, %5, %cst [1] : vector<16x32xf32> to vector<16xf32>
    %7 = vector.shape_cast %6 : vector<16xf32> to vector<16x1xf32>
    %cst_2 = arith.constant 3.125000e-02 : f32
    %8 = vector.broadcast %cst_2 : f32 to vector<16x1xf32>
    %9 = arith.mulf %7, %8 : vector<16x1xf32>
    %cst_3 = arith.constant 9.99999997E-7 : f32
    %10 = vector.broadcast %cst_3 : f32 to vector<16x1xf32>
    %11 = arith.addf %9, %10 : vector<16x1xf32>
    %12 = math.rsqrt %11 : vector<16x1xf32>
    %13 = vector.broadcast %12 : vector<16x1xf32> to vector<16x32xf32>
    %14 = arith.mulf %4, %13 : vector<16x32xf32>
    %15 = vector.broadcast %0 : vector<1x32xf32> to vector<16x32xf32>
    %16 = arith.mulf %15, %14 : vector<16x32xf32>
    %17 = arith.index_cast %2 : i32 to index
    %c0_4 = arith.constant 0 : index
    %18 = vector.load %arg3[%17, %c0_4] : memref<16x32xf32, #tpu.memory_space<vmem>>, vector<16x32xf32>
    tpu.vector_store %arg3[%17, %c0_4], %16 {strides = array<i32>} : memref<16x32xf32, #tpu.memory_space<vmem>>, vector<16x32xf32>,
    %c1_i32 = arith.constant 1 : i32
    return
  }
  func.func @transform_0(%arg0: i32) -> (i32, i32) {
    %c0_i32 = arith.constant 0 : i32
    %c0_i32_0 = arith.constant 0 : i32
    return %arg0, %c0_i32 : i32, i32
  }
  func.func @transform_1(%arg0: i32) -> (i32, i32) {
    %c0_i32 = arith.constant 0 : i32
    %c0_i32_0 = arith.constant 0 : i32
    %c0_i32_1 = arith.constant 0 : i32
    return %c0_i32, %c0_i32_0 : i32, i32
  }
  func.func @transform_2(%arg0: i32) -> (i32, i32) {
    %c0_i32 = arith.constant 0 : i32
    %c0_i32_0 = arith.constant 0 : i32
    return %arg0, %c0_i32 : i32, i32
  }
}

</mosaic_0001>

<llo_original>
// kernel: tpu_custom_call.1
$region0: #{tpu_custom_call.1}
  #allocation0 [shape = 'u32[]', space=smem, size = 0x4, offset = 0x4, fixed_abs, tag = 'smem constant byte address 0x4 - core index']
  #allocation1 [shape = 'u32[72,128]{1,0:T(1,128)}', space=vmem, size = 0x9000, scoped, tag = 'internal scratch']
  %s0 = inlined_call_operand.hbm [shape: f32[16,32], index: 0, kind: input, shape index: {}]
  %s1 = inlined_call_operand.hbm [shape: f32[1,32], index: 1, kind: input, shape index: {}]
  %s2 = inlined_call_operand.hbm [shape: f32[16,32], index: 2, kind: output, shape index: {}]
  %s3 = sld [smem:[#allocation0]]
  $region26: #{tpu_custom_call.1} parent=0
    _
  %s5 = ssub.s32 1, %s3
  %s6 = scalar_select 0, %s5, %s3
  $region1: #{tpu_custom_call.1} parent=0
    #allocation2 [shape = 'u8[8192]{0}', space=vmem, size = 0x2000, scoped, tag = 'input window, operand 0, single buffered']
    #allocation3 [shape = 's32[1]{0}', space=sflag, size = 0x4, scoped, tag = 'scoped memory for tpu_custom_call.1']
    #allocation4 [shape = 's32[1]{0}', space=sflag, size = 0x4, scoped, tag = 'scoped memory for tpu_custom_call.1']
    #allocation5 [shape = 'u8[512]{0}', space=vmem, size = 0x400, scoped, tag = 'input window, operand 1, single buffered']
    #allocation6 [shape = 's32[1]{0}', space=sflag, size = 0x4, scoped, tag = 'scoped memory for tpu_custom_call.1']
    #allocation7 [shape = 'u8[8192]{0}', space=vmem, size = 0x2000, scoped, tag = 'output window, operand 0, single buffered']
    %7 = vsyncpa [#allocation3], 0
    %8 = vsyncpa [#allocation6], 0
    %9 = vsyncpa [#allocation4], 0
    // Predicated region
    $region2: #{tpu_custom_call.1} parent=1 // pred_check
      _
    $region3: #{tpu_custom_call.1} parent=1 // pred_check_branch
      %11 = sbr.rel (0) target = $region5
    $region4: #{tpu_custom_call.1} parent=1 // pred_region
      %13 = vsyncadd [#allocation3], 0
      %s14 = sshll.u32 %s0, 4
      %s15 = int_to_ptr.hbm [resolvable:$true] %s14
      %s16 = sshll.u32 [#allocation2], 4
      %s17 = int_to_ptr.vmem [resolvable:$true] %s16
      %22 = dma.hbm_to_vmem [thread:$0]  %s15, 256, %s17, [#allocation3], 128, 128, 8
    $region5: #{tpu_custom_call.1} parent=1 // pred_fallthru
      _
    // Predicated region
    $region6: #{tpu_custom_call.1} parent=1 // pred_check
      _
    $region7: #{tpu_custom_call.1} parent=1 // pred_check_branch
      %24 = sbr.rel (0) target = $region9
    $region8: #{tpu_custom_call.1} parent=1 // pred_region
      %26 = vsyncadd [#allocation6], 0
      %s28 = sshll.u32 %s1, 4
      %s29 = int_to_ptr.hbm [resolvable:$true] %s28
      %s30 = sshll.u32 [#allocation5], 4
      %s31 = int_to_ptr.vmem [resolvable:$true] %s30
      %33 = dma.hbm_to_vmem [thread:$0]  %s29, 16, %s31, [#allocation6]
    $region9: #{tpu_custom_call.1} parent=1 // pred_fallthru
      _
    // Predicated region
    $region10: #{tpu_custom_call.1} parent=1 // pred_check
      _
    $region11: #{tpu_custom_call.1} parent=1 // pred_check_branch
      %35 = sbr.rel (0) target = $region13
    $region12: #{tpu_custom_call.1} parent=1 // pred_region
      %37 = dma.done [#allocation3], 256
    $region13: #{tpu_custom_call.1} parent=1 // pred_fallthru
      _
    // Predicated region
    $region14: #{tpu_custom_call.1} parent=1 // pred_check
      _
    $region15: #{tpu_custom_call.1} parent=1 // pred_check_branch
      %39 = sbr.rel (0) target = $region17
    $region16: #{tpu_custom_call.1} parent=1 // pred_region
      %41 = dma.done [#allocation6], 16
    $region17: #{tpu_custom_call.1} parent=1 // pred_fallthru
      _
    %v42 = vld [vmem:[#allocation5] sm:$0x1]
    %v43 = vld [vmem:[#allocation2] sm:$0xff]
    %v44 = vld [vmem:[#allocation2 + $0x8] sm:$0xff]
    %v45 = vmul.f32 %v43, %v43
    %v46 = vmul.f32 %v44, %v44
    %vm47 = vcmask 261120
    %v48 = vsel %vm47, %v45, 0.0
    %49 = vadd.xlane.f32.xlu0 %v48
    %v50 = vpop.xlane.xlu0 %49
    %v51 = vsel %vm47, %v46, 0.0
    %52 = vadd.xlane.f32.xlu0 %v51
    %v53 = vpop.xlane.xlu0 %52
    %v54 = vmul.f32 %v50, 0.03125
    %v55 = vmul.f32 %v53, 0.03125
    %v56 = vadd.f32 %v54, 1e-06
    %v57 = vadd.f32 %v55, 1e-06
    %v58 = vrsqrt.pop %v56
    %v59 = vmul.f32 %v58, %v56
    %v60 = vmul.f32 %v59, %v58
    %v61 = vmul.f32 0.5, %v60
    %v62 = vsub.f32 1.5, %v61
    %v63 = vmul.f32 %v58, %v62
    %vm64 = vweird.f32 %v56
    %vm65 = vweird.f32 %v58
    %vm66 = vmor %vm64, %vm65
    %v67 = vsel %vm66, %v58, %v63
    %v68 = vrsqrt.pop %v57
    %v69 = vmul.f32 %v68, %v57
    %v70 = vmul.f32 %v69, %v68
    %v71 = vmul.f32 0.5, %v70
    %v72 = vsub.f32 1.5, %v71
    %v73 = vmul.f32 %v68, %v72
    %vm74 = vweird.f32 %v57
    %vm75 = vweird.f32 %v68
    %vm76 = vmor %vm74, %vm75
    %v77 = vsel %vm76, %v68, %v73
    %v78 = vmul.f32 %v43, %v67
    %v79 = vmul.f32 %v44, %v77
    %v81 = vperm.slane %v42, 0
    %v83 = vmul.f32 %v81, %v78
    %v84 = vmul.f32 %v81, %v79
    %85 = vst.msk [vmem:[#allocation7] sm:$0xff] %vm47, %v83
    %86 = vst.msk [vmem:[#allocation7 + $0x8] sm:$0xff] %vm47, %v84
    // Predicated region
    $region18: #{tpu_custom_call.1} parent=1 // pred_check
      _
    $region19: #{tpu_custom_call.1} parent=1 // pred_check_branch
      %88 = sbr.rel (0) target = $region21
    $region20: #{tpu_custom_call.1} parent=1 // pred_region
      %90 = vsyncadd [#allocation4], 0
      %s91 = sshll.u32 [#allocation7], 4
      %s92 = int_to_ptr.vmem [resolvable:$true] %s91
      %s93 = sshll.u32 %s2, 4
      %s94 = int_to_ptr.hbm [resolvable:$true] %s93
      %99 = dma.vmem_to_hbm [thread:$0]  %s92, 256, %s94, [#allocation4], 128, 128, 8
    $region21: #{tpu_custom_call.1} parent=1 // pred_fallthru
      _
    // Predicated region
    $region22: #{tpu_custom_call.1} parent=1 // pred_check
      _
    $region23: #{tpu_custom_call.1} parent=1 // pred_check_branch
      %101 = sbr.rel (0) target = $region25
    $region24: #{tpu_custom_call.1} parent=1 // pred_region
      %103 = dma.done [#allocation4], 256
    $region25: #{tpu_custom_call.1} parent=1 // pred_fallthru
      _
    %104 = vsyncpa [#allocation3], 1
    %105 = vsyncpa [#allocation6], 1
    %106 = vsyncpa [#allocation4], 1

</llo_original>
